<compile_context>
chip_gen: v6e
topology: v6e:2x2x1
jax: 0.10.0
libtpu: 0.0.40
codegen_flags: <defaults>
</compile_context>

<pallas_src>
import math

import jax
import jax.numpy as jnp
from jax import lax
from jax.experimental import pallas as pl
from jax.experimental.pallas import tpu as pltpu


def _vq_kernel(x_ref, embed_ref, e2_ref, q_ref, ind_ref, best_ref):
    # x_ref:     (D, TN)   input vectors (transposed), resident across the K axis
    # embed_ref: (TK, D)   current codebook chunk
    # e2_ref:    (TK, 1)   precomputed ||e_c||^2 for this chunk
    # q_ref:     (D, TN)   quantized output (transposed), resident across the K axis
    # ind_ref:   (1, TN)   int32 nearest-codeword index, lane-dense
    # best_ref:  (1, TN)   f32 running best score (VMEM scratch)
    k = pl.program_id(1)
    tile_k = embed_ref.shape[0]

    x = x_ref[...].astype(jnp.float32)          # (D, TN)
    e = embed_ref[...].astype(jnp.float32)      # (TK, D)
    e2 = e2_ref[...].astype(jnp.float32)        # (TK, 1)

    # score[c, n] = 2 <e_c, x_n> - ||e_c||^2 ; argmax_c score == nearest codeword
    # (the ||x_n||^2 term of the Euclidean distance is constant per column n).
    xe = lax.dot_general(e, x, (((1,), (0,)), ((), ())),
                         preferred_element_type=jnp.float32)       # (TK, TN)
    score = 2.0 * xe - e2                                          # (TK, TN)

    # first-occurrence argmax within this codebook chunk
    iota = lax.broadcasted_iota(jnp.int32, score.shape, 0)         # (TK, TN)
    iota_f = iota.astype(jnp.float32)
    chunk_max = jnp.max(score, axis=0, keepdims=True)              # (1, TN)
    chunk_arg_f = jnp.min(
        jnp.where(score == chunk_max, iota_f, jnp.float32(tile_k)),
        axis=0, keepdims=True)                                     # (1, TN), exact ints

    # dequantize this chunk's winner on the MXU: q[d, n] = sum_c onehot[c,n] * e[c,d]
    onehot = (iota_f == chunk_arg_f).astype(jnp.float32)           # (TK, TN)
    chunk_q = lax.dot_general(e, onehot, (((0,), (0,)), ((), ())),
                              preferred_element_type=jnp.float32)  # (D, TN)
    chunk_idx = chunk_arg_f.astype(jnp.int32) + k * tile_k         # global codeword id

    @pl.when(k == 0)
    def _init():
        best_ref[...] = chunk_max
        ind_ref[...] = chunk_idx
        q_ref[...] = chunk_q.astype(q_ref.dtype)

    @pl.when(k > 0)
    def _update():
        # strict ">" keeps the earlier chunk on ties -> first-occurrence argmax
        better = chunk_max > best_ref[...]                         # (1, TN) bool
        best_ref[...] = jnp.where(better, chunk_max, best_ref[...])
        ind_ref[...] = jnp.where(better, chunk_idx, ind_ref[...])
        q_ref[...] = jnp.where(better, chunk_q,
                               q_ref[...].astype(jnp.float32)).astype(q_ref.dtype)


def vector_quantization_forward(x, embed, *, tile_n=256, tile_k=None):
    """Eval-mode VectorQuantization.forward.

    x:     (B, dim, T)  channels-first input (as the PyTorch module receives it)
    embed: (K, dim)     codebook (assumed already initialized)
    Returns (quantize (B, dim, T), embed_ind (B, T) int32, loss (1,) f32).
    """
    B, d, T = x.shape
    K, dk = embed.shape
    assert d == dk
    assert tile_n % 128 == 0, "tile_n must be a multiple of 128 (lane width)"
    N = B * T

    if tile_k is None:
        tile_k = K if K <= 512 else 512   # caps VMEM independent of codebook size

    n_pad = ((N + tile_n - 1) // tile_n) * tile_n
    k_pad = ((K + tile_k - 1) // tile_k) * tile_k

    # x laid out as (dim, N): column n = b*T + t holds x[b, :, t]
    x_t = jnp.transpose(x, (1, 0, 2)).reshape(d, N).astype(jnp.float32)
    x_t = jnp.pad(x_t, ((0, 0), (0, n_pad - N)))

    embed_f = embed.astype(jnp.float32)
    embed_p = jnp.pad(embed_f, ((0, k_pad - K), (0, 0)))
    # ||e_c||^2 precomputed once; padded codewords get a huge norm so they never win
    e2 = jnp.sum(embed_f * embed_f, axis=1, keepdims=True)
    e2 = jnp.pad(e2, ((0, k_pad - K), (0, 0)), constant_values=1e30)

    num_n = n_pad // tile_n
    num_k = k_pad // tile_k

    # rough per-call VMEM budget (double-buffered blocks + matmul temporaries)
    vmem_bytes = 4 * (4 * d * tile_n + 2 * tile_k * d + 2 * tile_k
                      + 3 * tile_n + 6 * tile_k * tile_n)
    vmem_bytes = min(max(vmem_bytes, 32 * 1024 * 1024), 64 * 1024 * 1024)

    q_t, ind = pl.pallas_call(
        _vq_kernel,
        out_shape=(
            jax.ShapeDtypeStruct((d, n_pad), x.dtype),
            jax.ShapeDtypeStruct((1, n_pad), jnp.int32),
        ),
        grid_spec=pltpu.PrefetchScalarGridSpec(
            num_scalar_prefetch=0,
            grid=(num_n, num_k),                                  # K (reduction) axis last
            in_specs=[
                pl.BlockSpec((d, tile_n), lambda i, k: (0, i)),   # x, resident across K
                pl.BlockSpec((tile_k, d), lambda i, k: (k, 0)),   # codebook chunk
                pl.BlockSpec((tile_k, 1), lambda i, k: (k, 0)),   # ||e||^2 chunk
            ],
            out_specs=[
                pl.BlockSpec((d, tile_n), lambda i, k: (0, i)),   # quantize^T (resident)
                pl.BlockSpec((1, tile_n), lambda i, k: (0, i)),   # indices, lane-dense
            ],
            scratch_shapes=[pltpu.VMEM((1, tile_n), jnp.float32)],
        ),
        compiler_params=pltpu.CompilerParams(
            dimension_semantics=("parallel", "arbitrary"),
            vmem_limit_bytes=vmem_bytes,
        ),
    )(x_t, embed_p, e2)

    quantize = jnp.transpose(q_t[:, :N].reshape(d, B, T), (1, 0, 2))   # (B, dim, T)
    embed_ind = ind[0, :N].reshape(B, T)
    loss = jnp.zeros((1,), jnp.float32)   # commitment loss is training-only
    return quantize, embed_ind, loss


def init_codebook(key, codebook_size, dim, dtype=jnp.float32):
    # uniform_init -> nn.init.kaiming_uniform_ on a (codebook_size, dim) tensor:
    # fan_in = dim, gain = sqrt(2), bound = gain * sqrt(3 / fan_in) = sqrt(6/dim)
    bound = math.sqrt(6.0 / dim)
    return jax.random.uniform(key, (codebook_size, dim), dtype=dtype,
                              minval=-bound, maxval=bound)


def reference_forward(x, embed):
    # pure-JAX replica of the PyTorch eval forward (codebook already initialized)
    B, d, T = x.shape
    xf = jnp.transpose(x, (0, 2, 1)).reshape(-1, d)
    dist = -(jnp.sum(xf * xf, axis=1, keepdims=True)
             - 2.0 * xf @ embed.T
             + jnp.sum(embed * embed, axis=1)[None, :])
    idx = jnp.argmax(dist, axis=-1)
    q = embed[idx]
    quantize = jnp.transpose(q.reshape(B, T, d), (0, 2, 1))
    return quantize, idx.reshape(B, T).astype(jnp.int32)


if __name__ == "__main__":
    key = jax.random.PRNGKey(0)
    k_embed, k_x = jax.random.split(key)

    B, dim, T = 2, 32, 8        # module input x: (batch, dim, seq), channels-first
    K = 128                     # codebook_size

    embed = init_codebook(k_embed, K, dim)
    x = jax.random.normal(k_x, (B, dim, T), dtype=jnp.float32)

    # tile_k=64 here only to exercise the multi-chunk online-argmax path at toy K;
    # for real codebooks the default (tile_k up to 512) is used.
    quantize, embed_ind, loss = vector_quantization_forward(x, embed, tile_k=64)
    quantize = jax.block_until_ready(quantize)
    embed_ind = jax.block_until_ready(embed_ind)
    loss = jax.block_until_ready(loss)

    q_ref, ind_ref = reference_forward(x, embed)

    assert quantize.shape == (B, dim, T)
    assert embed_ind.shape == (B, T)
    assert loss.shape == (1,)

    # the kernel's codeword must be (numerically) at least as close as the reference's
    xf = jnp.transpose(x, (0, 2, 1)).reshape(-1, dim)
    d_ker = jnp.sum((xf - embed[embed_ind.reshape(-1)]) ** 2, axis=-1)
    d_ref = jnp.sum((xf - embed[ind_ref.reshape(-1)]) ** 2, axis=-1)
    assert bool(jnp.all(d_ker <= d_ref + 1e-4))

    # dequantize must reproduce the selected codeword (channels-first layout)
    q_sel = jnp.transpose(embed[embed_ind.reshape(-1)].reshape(B, T, dim), (0, 2, 1))
    assert bool(jnp.allclose(quantize, q_sel, atol=1e-5))

    print("KERNEL_OK")
</pallas_src>

<mosaic_0001>
module attributes {stable_mosaic.version = 11 : i64} {
  func.func @_vq_kernel(%arg0: i32, %arg1: i32, %arg2: memref<32x256xf32, #tpu.memory_space<vmem>>, %arg3: memref<64x32xf32, #tpu.memory_space<vmem>>, %arg4: memref<64x1xf32, #tpu.memory_space<vmem>>, %arg5: memref<32x256xf32, #tpu.memory_space<vmem>>, %arg6: memref<1x256xi32, #tpu.memory_space<vmem>>, %arg7: memref<1x256xf32, #tpu.memory_space<vmem>>) attributes {dimension_semantics = [#tpu.dimension_semantics<parallel>, #tpu.dimension_semantics<arbitrary>], iteration_bounds = array<i64: 1, 2>, scalar_prefetch = 0 : i64, scratch_operands = 1 : i64, tpu.core_type = #tpu.core_type<tc>, window_params = [{transform_indices = @transform_0, window_bounds = array<i64: 32, 256>}, {transform_indices = @transform_1, window_bounds = array<i64: 64, 32>}, {transform_indices = @transform_2, window_bounds = array<i64: 64, 1>}, {transform_indices = @transform_3, window_bounds = array<i64: 32, 256>}, {transform_indices = @transform_4, window_bounds = array<i64: 1, 256>}]} {
    %c0 = arith.constant 0 : index
    %c0_0 = arith.constant 0 : index
    %0 = vector.load %arg2[%c0, %c0_0] : memref<32x256xf32, #tpu.memory_space<vmem>>, vector<32x256xf32>
    %c0_1 = arith.constant 0 : index
    %c0_2 = arith.constant 0 : index
    %1 = vector.load %arg3[%c0_1, %c0_2] : memref<64x32xf32, #tpu.memory_space<vmem>>, vector<64x32xf32>
    %c0_3 = arith.constant 0 : index
    %c0_4 = arith.constant 0 : index
    %2 = vector.load %arg4[%c0_3, %c0_4] : memref<64x1xf32, #tpu.memory_space<vmem>>, vector<64x1xf32>
    %cst = arith.constant dense<0.000000e+00> : vector<64x256xf32>
    %3 = tpu.matmul %1, %0, %cst {dimension_numbers = #tpu.dot_dimension_numbers<[1], [0], [0], [1], [0, 0, 1, 1], [], []>} : vector<64x32xf32>, vector<32x256xf32>, vector<64x256xf32> -> vector<64x256xf32>
    %cst_5 = arith.constant 2.000000e+00 : f32
    %4 = vector.broadcast %cst_5 : f32 to vector<64x256xf32>
    %5 = arith.mulf %4, %3 : vector<64x256xf32>
    %6 = vector.broadcast %2 : vector<64x1xf32> to vector<64x256xf32>
    %7 = arith.subf %5, %6 : vector<64x256xf32>
    %8 = tpu.iota {dimensions = array<i32: 0>} : vector<64x256xi32>
    %9 = arith.sitofp %8 : vector<64x256xi32> to vector<64x256xf32>
    %cst_6 = arith.constant dense<0xFF800000> : vector<256xf32>
    %10 = vector.multi_reduction <maximumf>, %7, %cst_6 [0] : vector<64x256xf32> to vector<256xf32>
    %11 = vector.shape_cast %10 : vector<256xf32> to vector<1x256xf32>
    %12 = vector.broadcast %11 : vector<1x256xf32> to vector<64x256xf32>
    %13 = arith.cmpf oeq, %7, %12 : vector<64x256xf32>
    %cst_7 = arith.constant 6.400000e+01 : f32
    %14 = vector.broadcast %cst_7 : f32 to vector<64x256xf32>
    %15 = arith.select %13, %9, %14 : vector<64x256xi1>, vector<64x256xf32>
    %cst_8 = arith.constant dense<0x7F800000> : vector<256xf32>
    %16 = vector.multi_reduction <minimumf>, %15, %cst_8 [0] : vector<64x256xf32> to vector<256xf32>
    %17 = vector.shape_cast %16 : vector<256xf32> to vector<1x256xf32>
    %18 = vector.broadcast %17 : vector<1x256xf32> to vector<64x256xf32>
    %19 = arith.cmpf oeq, %9, %18 : vector<64x256xf32>
    %20 = arith.extui %19 : vector<64x256xi1> to vector<64x256xi32>
    %21 = arith.sitofp %20 : vector<64x256xi32> to vector<64x256xf32>
    %cst_9 = arith.constant dense<0.000000e+00> : vector<32x256xf32>
    %22 = tpu.matmul %1, %21, %cst_9 {dimension_numbers = #tpu.dot_dimension_numbers<[0], [0], [1], [1], [0, 1, 1, 1], [], []>} : vector<64x32xf32>, vector<64x256xf32>, vector<32x256xf32> -> vector<32x256xf32>
    %23 = arith.fptosi %17 : vector<1x256xf32> to vector<1x256xi32>
    %c64_i32 = arith.constant 64 : i32
    %24 = arith.muli %arg1, %c64_i32 : i32
    %25 = vector.broadcast %24 : i32 to vector<1x256xi32>
    %26 = arith.addi %23, %25 : vector<1x256xi32>
    %c0_i32 = arith.constant 0 : i32
    %27 = arith.cmpi eq, %arg1, %c0_i32 : i32
    %28 = arith.extui %27 : i1 to i32
    %c0_i32_10 = arith.constant 0 : i32
    %29 = arith.cmpi ne, %28, %c0_i32_10 : i32
    scf.if %29 {
      %c0_13 = arith.constant 0 : index
      %c0_14 = arith.constant 0 : index
      %33 = vector.load %arg7[%c0_13, %c0_14] : memref<1x256xf32, #tpu.memory_space<vmem>>, vector<1x256xf32>
      tpu.vector_store %arg7[%c0_13, %c0_14], %11 {strides = array<i32>} : memref<1x256xf32, #tpu.memory_space<vmem>>, vector<1x256xf32>,
      %c0_15 = arith.constant 0 : index
      %c0_16 = arith.constant 0 : index
      %34 = vector.load %arg6[%c0_15, %c0_16] : memref<1x256xi32, #tpu.memory_space<vmem>>, vector<1x256xi32>
      tpu.vector_store %arg6[%c0_15, %c0_16], %26 {strides = array<i32>} : memref<1x256xi32, #tpu.memory_space<vmem>>, vector<1x256xi32>,
      %c0_17 = arith.constant 0 : index
      %c0_18 = arith.constant 0 : index
      %35 = vector.load %arg5[%c0_17, %c0_18] : memref<32x256xf32, #tpu.memory_space<vmem>>, vector<32x256xf32>
      tpu.vector_store %arg5[%c0_17, %c0_18], %22 {strides = array<i32>} : memref<32x256xf32, #tpu.memory_space<vmem>>, vector<32x256xf32>,
    } else {
    }
    %c0_i32_11 = arith.constant 0 : i32
    %30 = arith.cmpi sgt, %arg1, %c0_i32_11 : i32
    %31 = arith.extui %30 : i1 to i32
    %c0_i32_12 = arith.constant 0 : i32
    %32 = arith.cmpi ne, %31, %c0_i32_12 : i32
    scf.if %32 {
      %c0_13 = arith.constant 0 : index
      %c0_14 = arith.constant 0 : index
      %33 = vector.load %arg7[%c0_13, %c0_14] : memref<1x256xf32, #tpu.memory_space<vmem>>, vector<1x256xf32>
      %34 = arith.cmpf ogt, %11, %33 : vector<1x256xf32>
      %c0_15 = arith.constant 0 : index
      %c0_16 = arith.constant 0 : index
      %35 = vector.load %arg7[%c0_15, %c0_16] : memref<1x256xf32, #tpu.memory_space<vmem>>, vector<1x256xf32>
      %36 = arith.select %34, %11, %35 : vector<1x256xi1>, vector<1x256xf32>
      %c0_17 = arith.constant 0 : index
      %c0_18 = arith.constant 0 : index
      %37 = vector.load %arg7[%c0_17, %c0_18] : memref<1x256xf32, #tpu.memory_space<vmem>>, vector<1x256xf32>
      tpu.vector_store %arg7[%c0_17, %c0_18], %36 {strides = array<i32>} : memref<1x256xf32, #tpu.memory_space<vmem>>, vector<1x256xf32>,
      %c0_19 = arith.constant 0 : index
      %c0_20 = arith.constant 0 : index
      %38 = vector.load %arg6[%c0_19, %c0_20] : memref<1x256xi32, #tpu.memory_space<vmem>>, vector<1x256xi32>
      %39 = arith.select %34, %26, %38 : vector<1x256xi1>, vector<1x256xi32>
      %c0_21 = arith.constant 0 : index
      %c0_22 = arith.constant 0 : index
      %40 = vector.load %arg6[%c0_21, %c0_22] : memref<1x256xi32, #tpu.memory_space<vmem>>, vector<1x256xi32>
      tpu.vector_store %arg6[%c0_21, %c0_22], %39 {strides = array<i32>} : memref<1x256xi32, #tpu.memory_space<vmem>>, vector<1x256xi32>,
      %c0_23 = arith.constant 0 : index
      %c0_24 = arith.constant 0 : index
      %41 = vector.load %arg5[%c0_23, %c0_24] : memref<32x256xf32, #tpu.memory_space<vmem>>, vector<32x256xf32>
      %42 = vector.shape_cast %34 : vector<1x256xi1> to vector<1x256xi1>
      %43 = vector.broadcast %42 : vector<1x256xi1> to vector<32x256xi1>
      %44 = arith.select %43, %22, %41 : vector<32x256xi1>, vector<32x256xf32>
      %c0_25 = arith.constant 0 : index
      %c0_26 = arith.constant 0 : index
      %45 = vector.load %arg5[%c0_25, %c0_26] : memref<32x256xf32, #tpu.memory_space<vmem>>, vector<32x256xf32>
      tpu.vector_store %arg5[%c0_25, %c0_26], %44 {strides = array<i32>} : memref<32x256xf32, #tpu.memory_space<vmem>>, vector<32x256xf32>,
    } else {
    }
    return
  }
  func.func @transform_0(%arg0: i32, %arg1: i32) -> (i32, i32) {
    %c0_i32 = arith.constant 0 : i32
    %c0_i32_0 = arith.constant 0 : i32
    return %c0_i32, %arg0 : i32, i32
  }
  func.func @transform_1(%arg0: i32, %arg1: i32) -> (i32, i32) {
    %c0_i32 = arith.constant 0 : i32
    %c0_i32_0 = arith.constant 0 : i32
    return %arg1, %c0_i32 : i32, i32
  }
  func.func @transform_2(%arg0: i32, %arg1: i32) -> (i32, i32) {
    %c0_i32 = arith.constant 0 : i32
    %c0_i32_0 = arith.constant 0 : i32
    return %arg1, %c0_i32 : i32, i32
  }
  func.func @transform_3(%arg0: i32, %arg1: i32) -> (i32, i32) {
    %c0_i32 = arith.constant 0 : i32
    %c0_i32_0 = arith.constant 0 : i32
    return %c0_i32, %arg0 : i32, i32
  }
  func.func @transform_4(%arg0: i32, %arg1: i32) -> (i32, i32) {
    %c0_i32 = arith.constant 0 : i32
    %c0_i32_0 = arith.constant 0 : i32
    return %c0_i32, %arg0 : i32, i32
  }
}

</mosaic_0001>

<llo_original>
// kernel: tpu_custom_call.1
$region0: #{tpu_custom_call.1}
  #allocation0 [shape = 'u32[]', space=smem, size = 0x4, offset = 0x4, fixed_abs, tag = 'smem constant byte address 0x4 - core index']
  #allocation1 [shape = 'u32[144,128]{1,0:T(1,128)}', space=vmem, size = 0x12000, scoped, tag = 'internal scratch']
  #allocation2 [shape = 'f32[1,256]{1,0:T(1,128)}', space=vmem, size = 0x400, scoped, tag = 'scratch operand']
  %s0 = inlined_call_operand.vmem [shape: f32[32,256], index: 0, kind: input, shape index: {}]
  %s1 = inlined_call_operand.vmem [shape: f32[128,32], index: 1, kind: input, shape index: {}]
  %s2 = inlined_call_operand.vmem [shape: f32[128,1], index: 2, kind: input, shape index: {}]
  %s3 = inlined_call_operand.hbm [shape: f32[32,256], index: 3, kind: output, shape index: {0}]
  %s4 = inlined_call_operand.hbm [shape: s32[1,256], index: 4, kind: output, shape index: {1}]
  %5 = xla_tuple %s3, %s4
  %s6 = sld [smem:[#allocation0]]
  $region61: #{tpu_custom_call.1} parent=0
    _
  %s8 = ssub.s32 1, %s6
  %s9 = scalar_select 0, %s8, %s6
  $region1: #{tpu_custom_call.1} parent=0
    #allocation3 [shape = 'u8[32768]{0}', space=vmem, size = 0x8000, scoped, tag = 'output window, operand 0, single buffered']
    #allocation4 [shape = 's32[2]{0}', space=sflag, size = 0x8, scoped, tag = 'scoped memory for tpu_custom_call.1']
    #allocation5 [shape = 'u8[1024]{0}', space=vmem, size = 0x400, scoped, tag = 'output window, operand 1, single buffered']
    #allocation6 [shape = 's32[1]{0}', space=sflag, size = 0x4, scoped, tag = 'scoped memory for tpu_custom_call.1']
    %10 = vsyncpa [#allocation4], 0
    %11 = vsyncpa [#allocation6], 0
    loop: start=0, step=1, limit=4
    $region2: #{tpu_custom_call.1} parent=1 // loop_pre_header
      _
    $region3: #{tpu_custom_call.1} parent=1 // loop_header
      %s13 = sphi 0, %s17
      %p14 = scmp.ge.s32.totalorder %s13, 4
      %s20 = sphi 0, %s32
      %s21 = sphi 0, %s28
      %s22 = sphi 0, %s20
      %s23 = sphi 0, %s21
      %s24 = sphi 0, %s22
      %s25 = sphi 0, %s23
      %s35 = sphi 0, %s37
      %s38 = sphi 0, %s35
      %s39 = sphi 0, %s38
      %s55 = sphi 0, %s39
      %s61 = sphi 0, %s63
      %s64 = sphi 0, %s61
      %s65 = sphi 0, %s64
      %s81 = sphi 0, %s65
      %s87 = sphi 0, %s89
      %s90 = sphi 0, %s87
      %s91 = sphi 0, %s90
      %s107 = sphi 0, %s91
      %s113 = sphi 0, %s115
      %s116 = sphi 0, %s113
      %s117 = sphi 0, %s116
      %s133 = sphi 0, %s117
      %s139 = sphi 0, %s141
      %s142 = sphi 0, %s139
      %s143 = sphi 0, %s142
      %s159 = sphi 0, %s143
    $region4: #{tpu_custom_call.1} parent=1 // loop_header_branch
      %16 = sbr.rel (%p14) target = $region8
    $region5: #{tpu_custom_call.1} parent=1 // loop_body
      %s18 = ssub.s32 %s13, 1
      %s19 = ssub.s32 %s13, 2
      %s26 = sadd.s32 1, %s21
      %p27 = scmp.ge.s32.totalorder %s26, 2
      %s28 = scalar_select %p27, 0, %s26
      %s29 = sadd.s32 1, %s20
      %s30 = scalar_select %p27, %s29, %s20
      %p31 = scmp.ge.s32.totalorder %s30, 1
      %s32 = scalar_select %p31, 0, %s30
      %s33 = ssub.s32 %s20, %s32
      %p34 = scmp.eq.s32.totalorder %s33, 0
      %s36 = sadd.s32 %s35, 1
      %s37 = scalar_select %p34, %s35, %s36
      %p40 = pneg %p34
      %p41 = scmp.eq.s32.totalorder %s13, 1
      %p42 = por %p40, %p41
      %p43 = scmp.ne.s32.totalorder %s35, %s38
      %p44 = scmp.eq.s32.totalorder %s13, 0
      %p45 = por %p43, %p44
      %p46 = scmp.ne.s32.totalorder %s35, %s38
      %p47 = scmp.eq.s32.totalorder %s18, 1
      %p48 = por %p46, %p47
      %p49 = scmp.ne.s32.totalorder %s38, %s39
      %p50 = scmp.eq.s32.totalorder %s18, 0
      %p51 = por %p49, %p50
      %p52 = scmp.ne.s32.totalorder %s38, %s39
      %p53 = scmp.eq.s32.totalorder %s19, 1
      %p54 = por %p52, %p53
      %p56 = scmp.ne.s32.totalorder %s39, %s55
      %p57 = scmp.eq.s32.totalorder %s19, 0
      %p58 = por %p56, %p57
      %s59 = ssub.s32 %s21, %s28
      %p60 = scmp.eq.s32.totalorder %s59, 0
      %s62 = sadd.s32 %s61, 1
      %s63 = scalar_select %p60, %s61, %s62
      %p66 = pneg %p60
      %p67 = scmp.eq.s32.totalorder %s13, 1
      %p68 = por %p66, %p67
      %p69 = scmp.ne.s32.totalorder %s61, %s64
      %p70 = scmp.eq.s32.totalorder %s13, 0
      %p71 = por %p69, %p70
      %p72 = scmp.ne.s32.totalorder %s61, %s64
      %p73 = scmp.eq.s32.totalorder %s18, 1
      %p74 = por %p72, %p73
      %p75 = scmp.ne.s32.totalorder %s64, %s65
      %p76 = scmp.eq.s32.totalorder %s18, 0
      %p77 = por %p75, %p76
      %p78 = scmp.ne.s32.totalorder %s64, %s65
      %p79 = scmp.eq.s32.totalorder %s19, 1
      %p80 = por %p78, %p79
      %p82 = scmp.ne.s32.totalorder %s65, %s81
      %p83 = scmp.eq.s32.totalorder %s19, 0
      %p84 = por %p82, %p83
      %s85 = ssub.s32 %s21, %s28
      %p86 = scmp.eq.s32.totalorder %s85, 0
      %s88 = sadd.s32 %s87, 1
      %s89 = scalar_select %p86, %s87, %s88
      %p92 = pneg %p86
      %p93 = scmp.eq.s32.totalorder %s13, 1
      %p94 = por %p92, %p93
      %p95 = scmp.ne.s32.totalorder %s87, %s90
      %p96 = scmp.eq.s32.totalorder %s13, 0
      %p97 = por %p95, %p96
      %p98 = scmp.ne.s32.totalorder %s87, %s90
      %p99 = scmp.eq.s32.totalorder %s18, 1
      %p100 = por %p98, %p99
      %p101 = scmp.ne.s32.totalorder %s90, %s91
      %p102 = scmp.eq.s32.totalorder %s18, 0
      %p103 = por %p101, %p102
      %p104 = scmp.ne.s32.totalorder %s90, %s91
      %p105 = scmp.eq.s32.totalorder %s19, 1
      %p106 = por %p104, %p105
      %p108 = scmp.ne.s32.totalorder %s91, %s107
      %p109 = scmp.eq.s32.totalorder %s19, 0
      %p110 = por %p108, %p109
      %s111 = ssub.s32 %s20, %s32
      %p112 = scmp.eq.s32.totalorder %s111, 0
      %s114 = sadd.s32 %s113, 1
      %s115 = scalar_select %p112, %s113, %s114
      %p118 = pneg %p112
      %p119 = scmp.eq.s32.totalorder %s13, 1
      %p120 = por %p118, %p119
      %p121 = scmp.ne.s32.totalorder %s113, %s116
      %p122 = scmp.eq.s32.totalorder %s13, 0
      %p123 = por %p121, %p122
      %p124 = scmp.ne.s32.totalorder %s113, %s116
      %p125 = scmp.eq.s32.totalorder %s18, 1
      %p126 = por %p124, %p125
      %p127 = scmp.ne.s32.totalorder %s116, %s117
      %p128 = scmp.eq.s32.totalorder %s18, 0
      %p129 = por %p127, %p128
      %p130 = scmp.ne.s32.totalorder %s116, %s117
      %p131 = scmp.eq.s32.totalorder %s19, 1
      %p132 = por %p130, %p131
      %p134 = scmp.ne.s32.totalorder %s117, %s133
      %p135 = scmp.eq.s32.totalorder %s19, 0
      %p136 = por %p134, %p135
      %s137 = ssub.s32 %s20, %s32
      %p138 = scmp.eq.s32.totalorder %s137, 0
      %s140 = sadd.s32 %s139, 1
      %s141 = scalar_select %p138, %s139, %s140
      %p144 = pneg %p138
      %p145 = scmp.eq.s32.totalorder %s13, 1
      %p146 = por %p144, %p145
      %p147 = scmp.ne.s32.totalorder %s139, %s142
      %p148 = scmp.eq.s32.totalorder %s13, 0
      %p149 = por %p147, %p148
      %p150 = scmp.ne.s32.totalorder %s139, %s142
      %p151 = scmp.eq.s32.totalorder %s18, 1
      %p152 = por %p150, %p151
      %p153 = scmp.ne.s32.totalorder %s142, %s143
      %p154 = scmp.eq.s32.totalorder %s18, 0
      %p155 = por %p153, %p154
      %p156 = scmp.ne.s32.totalorder %s142, %s143
      %p157 = scmp.eq.s32.totalorder %s19, 1
      %p158 = por %p156, %p157
      %p160 = scmp.ne.s32.totalorder %s143, %s159
      %p161 = scmp.eq.s32.totalorder %s19, 0
      %p162 = por %p160, %p161
      %p163 = scmp.le.s32.totalorder 1, %s13
      %p164 = scmp.lt.s32.totalorder %s13, 3
      %p165 = pnand %p163, %p164
      %p166 = pneg %p165
      // Predicated region
      $region9: #{tpu_custom_call.1} parent=5 // pred_check
        _
      $region10: #{tpu_custom_call.1} parent=5 // pred_check_branch
        %168 = sbr.rel (%p165) target = $region12
      $region11: #{tpu_custom_call.1} parent=5 // pred_region
        %s169 = ssub.s32 %s13, 1
        // Predicated region
        $region13: #{tpu_custom_call.1} parent=11 // pred_check
          %p170 = pneg %p51
        $region14: #{tpu_custom_call.1} parent=11 // pred_check_branch
          %172 = sbr.rel (%p170) target = $region16
        $region15: #{tpu_custom_call.1} parent=11 // pred_region
          %s173 = smul.u32 2, %s22
          %p174 = scmp.lt.s32.totalorder %s173, 1
          %s175 = scalar_select %p174, %s173, 1
          %s176 = smul.addr %s175, 8
          %s177 = scalar_lea.vmem %s0, %s176
          %s178 = smul.u32 2, %s22
        $region16: #{tpu_custom_call.1} parent=11 // pred_fallthru
          _
      $region12: #{tpu_custom_call.1} parent=5 // pred_fallthru
        _
      %p179 = scmp.lt.s32.totalorder %s13, 2
      // Predicated region
      $region17: #{tpu_custom_call.1} parent=5 // pred_check
        %p180 = pneg %p179
      $region18: #{tpu_custom_call.1} parent=5 // pred_check_branch
        %182 = sbr.rel (%p180) target = $region20
      $region19: #{tpu_custom_call.1} parent=5 // pred_region
        // Predicated region
        $region21: #{tpu_custom_call.1} parent=19 // pred_check
          %p183 = pneg %p71
        $region22: #{tpu_custom_call.1} parent=19 // pred_check_branch
          %185 = sbr.rel (%p183) target = $region24
        $region23: #{tpu_custom_call.1} parent=19 // pred_region
          %s186 = smul.u32 8, %s21
          %p187 = scmp.lt.s32.totalorder %s186, 15
          %s188 = scalar_select %p187, %s186, 15
          %s189 = smul.addr %s188, 8
          %s190 = scalar_lea.vmem %s1, %s189
          %s191 = smul.u32 8, %s21
        $region24: #{tpu_custom_call.1} parent=19 // pred_fallthru
          _
        // Predicated region
        $region25: #{tpu_custom_call.1} parent=19 // pred_check
          %p192 = pneg %p97
        $region26: #{tpu_custom_call.1} parent=19 // pred_check_branch
          %194 = sbr.rel (%p192) target = $region28
        $region27: #{tpu_custom_call.1} parent=19 // pred_region
          %s195 = smul.u32 8, %s21
          %p196 = scmp.lt.s32.totalorder %s195, 15
          %s197 = scalar_select %p196, %s195, 15
          %s198 = smul.addr %s197, 8
          %s199 = scalar_lea.vmem %s2, %s198
          %s200 = smul.u32 8, %s21
        $region28: #{tpu_custom_call.1} parent=19 // pred_fallthru
          _
      $region20: #{tpu_custom_call.1} parent=5 // pred_fallthru
        _
      %p201 = scmp.le.s32.totalorder 1, %s13
      %p202 = scmp.lt.s32.totalorder %s13, 3
      %p203 = pnand %p201, %p202
      %p204 = pneg %p203
      // Predicated region
      $region29: #{tpu_custom_call.1} parent=5 // pred_check
        _
      $region30: #{tpu_custom_call.1} parent=5 // pred_check_branch
        %206 = sbr.rel (%p203) target = $region32
      $region31: #{tpu_custom_call.1} parent=5 // pred_region
        %s207 = ssub.s32 %s13, 1
        %s208 = smul.u32 2, %s22
        %p209 = scmp.lt.s32.totalorder %s208, 1
        %s210 = scalar_select %p209, %s208, 1
        %s211 = smul.addr %s210, 8
        %s212 = scalar_lea.vmem %s0, %s211
        %p213 = pneg %p51
        %p214 = pneg %p48
        %s215 = smul.u32 8, %s23
        %p216 = scmp.lt.s32.totalorder %s215, 15
        %s217 = scalar_select %p216, %s215, 15
        %s218 = smul.addr %s217, 8
        %s219 = scalar_lea.vmem %s1, %s218
        %p220 = pneg %p77
        %p221 = pneg %p74
        %s222 = smul.u32 8, %s23
        %p223 = scmp.lt.s32.totalorder %s222, 15
        %s224 = scalar_select %p223, %s222, 15
        %s225 = smul.addr %s224, 8
        %s226 = scalar_lea.vmem %s2, %s225
        %p227 = pneg %p103
        %p228 = pneg %p100
        %p229 = pneg %p129
        %p230 = pneg %p126
        %p231 = pneg %p155
        %p232 = pneg %p152
        %s233 = smul.u32 2, %s22
        %p234 = scmp.lt.s32.totalorder %s233, 1
        %s235 = scalar_select %p234, %s233, 1
        %s236 = smul.addr %s235, 8
        %s237 = scalar_lea.vmem %s0, %s236
        %s238 = smul.u32 2, %s22
        %s239 = smul.u32 8, %s23
        %p240 = scmp.lt.s32.totalorder %s239, 15
        %s241 = scalar_select %p240, %s239, 15
        %s242 = smul.addr %s241, 8
        %s243 = scalar_lea.vmem %s1, %s242
        %s244 = smul.u32 8, %s23
        %s245 = smul.u32 8, %s23
        %p246 = scmp.lt.s32.totalorder %s245, 15
        %s247 = scalar_select %p246, %s245, 15
        %s248 = smul.addr %s247, 8
        %s249 = scalar_lea.vmem %s2, %s248
        %s250 = smul.u32 8, %s23
        %s251 = smul.u32 2, %s22
        %s252 = smul.u32 2, %s22
        %v253 = vld [vmem:[%s237] sm:$0xff]
        %v254 = vld [vmem:[%s237 + $0x8] sm:$0xff]
        %v255 = vld [vmem:[%s237 + $0x10] sm:$0xff]
        %v256 = vld [vmem:[%s237 + $0x18] sm:$0xff]
        %v257 = vld [vmem:[%s237 + $0x20] sm:$0xff]
        %v258 = vld [vmem:[%s237 + $0x28] sm:$0xff]
        %v259 = vld [vmem:[%s237 + $0x30] sm:$0xff]
        %v260 = vld [vmem:[%s237 + $0x38] sm:$0xff]
        %v261 = vld [vmem:[%s243] sm:$0xff]
        %v262 = vld [vmem:[%s243 + $0x8] sm:$0xff]
        %v263 = vld [vmem:[%s243 + $0x10] sm:$0xff]
        %v264 = vld [vmem:[%s243 + $0x18] sm:$0xff]
        %v265 = vld [vmem:[%s243 + $0x20] sm:$0xff]
        %v266 = vld [vmem:[%s243 + $0x28] sm:$0xff]
        %v267 = vld [vmem:[%s243 + $0x30] sm:$0xff]
        %v268 = vld [vmem:[%s243 + $0x38] sm:$0xff]
        %v269 = vld [vmem:[%s249] sm:$0xff]
        %v270 = vld [vmem:[%s249 + $0x8] sm:$0xff]
        %v271 = vld [vmem:[%s249 + $0x10] sm:$0xff]
        %v272 = vld [vmem:[%s249 + $0x18] sm:$0xff]
        %v273 = vld [vmem:[%s249 + $0x20] sm:$0xff]
        %v274 = vld [vmem:[%s249 + $0x28] sm:$0xff]
        %v275 = vld [vmem:[%s249 + $0x30] sm:$0xff]
        %v276 = vld [vmem:[%s249 + $0x38] sm:$0xff]
        %vm277 = vcmask 261120
        %v279 = vsel %vm277, %v261, 0
        %v282 = vsel %vm277, %v262, 0
        %v285 = vsel %vm277, %v263, 0
        %v288 = vsel %vm277, %v264, 0
        %v291 = vsel %vm277, %v265, 0
        %v294 = vsel %vm277, %v266, 0
        %v297 = vsel %vm277, %v267, 0
        %v300 = vsel %vm277, %v268, 0
        %302 = vmatprep.subr.mxu0 0.0
        %303 = vmatpush1.msra.mxu0 0.0
        %304 = vmatprep.subr.mxu0 0.0
        %305 = vmatpush1.msra.mxu0 0.0
        %306 = vmatprep.subr.mxu0 0.0
        %307 = vmatpush1.msra.mxu0 0.0
        %308 = vmatprep.subr.mxu0 0.0
        %309 = vmatpush1.msra.mxu0 0.0
        %310 = vmatprep.subr.mxu0 0.0
        %311 = vmatpush1.msra.mxu0 0.0
        %312 = vmatprep.subr.mxu0 0.0
        %313 = vmatpush1.msra.mxu0 0.0
        %314 = vmatprep.subr.mxu0 0.0
        %315 = vmatpush1.msra.mxu0 0.0
        %316 = vmatprep.subr.mxu0 0.0
        %317 = vmatpush1.msra.mxu0 0.0
        %318 = vmatprep.subr.mxu0 0.0
        %319 = vmatpush1.msra.mxu0 0.0
        %320 = vmatprep.subr.mxu0 0.0
        %321 = vmatpush1.msra.mxu0 0.0
        %322 = vmatprep.subr.mxu0 0.0
        %323 = vmatpush1.msra.mxu0 0.0
        %324 = vmatprep.subr.mxu0 0.0
        %325 = vmatpush1.msra.mxu0 0.0
        %326 = vmatprep.subr.mxu0 %v260
        %327 = vmatpush1.msra.mxu0 %v259
        %328 = vmatprep.subr.mxu0 %v258
        %329 = vmatpush1.msra.mxu0 %v257
        %330 = vmatprep.subr.mxu0 %v256
        %331 = vmatpush1.msra.mxu0 %v255
        %332 = vmatprep.subr.mxu0 %v254
        %333 = vmatpush1.msra.mxu0 %v253
        %334 = vmatprep.subr.mxu0 0.0
        %335 = vmatpush2.msra.mxu0 0.0
        %336 = vmatprep.subr.mxu0 0.0
        %337 = vmatpush2.msra.mxu0 0.0
        %338 = vmatprep.subr.mxu0 0.0
        %339 = vmatpush2.msra.mxu0 0.0
        %340 = vmatprep.subr.mxu0 0.0
        %341 = vmatpush2.msra.mxu0 0.0
        %342 = vmatprep.subr.mxu0 0.0
        %343 = vmatpush2.msra.mxu0 0.0
        %344 = vmatprep.subr.mxu0 0.0
        %345 = vmatpush2.msra.mxu0 0.0
        %346 = vmatprep.subr.mxu0 0.0
        %347 = vmatpush2.msra.mxu0 0.0
        %348 = vmatprep.subr.mxu0 0.0
        %349 = vmatpush2.msra.mxu0 0.0
        %350 = vmatprep.subr.mxu0 0.0
        %351 = vmatpush2.msra.mxu0 0.0
        %352 = vmatprep.subr.mxu0 0.0
        %353 = vmatpush2.msra.mxu0 0.0
        %354 = vmatprep.subr.mxu0 0.0
        %355 = vmatpush2.msra.mxu0 0.0
        %356 = vmatprep.subr.mxu0 0.0
        %357 = vmatpush2.msra.mxu0 0.0
        %358 = vmatprep.subr.mxu0 0.0
        %359 = vmatpush2.msra.mxu0 0.0
        %360 = vmatprep.subr.mxu0 0.0
        %361 = vmatpush2.msra.mxu0 0.0
        %362 = vmatprep.subr.mxu0 0.0
        %363 = vmatpush2.msra.mxu0 0.0
        %364 = vmatprep.subr.mxu0 0.0
        %365 = vmatpush2.msra.mxu0 0.0
        %366 = vmatprep.mubr.f32.mxu0 0.0
        %367 = vmatmul.mubr.f32.gmra.mxu0 %v279
        %v368 = vpop.f32.mrf.mxu0
        %v369 = vadd.f32 0.0, %v368
        %v370 = vpop.f32.mrf.mxu0
        %v371 = vadd.f32 0.0, %v370
        %372 = vmatprep.mubr.f32.mxu0 0.0
        %373 = vmatmul.mubr.f32.gmra.mxu0 %v282
        %v374 = vpop.f32.mrf.mxu0
        %v375 = vadd.f32 0.0, %v374
        %v376 = vpop.f32.mrf.mxu0
        %v377 = vadd.f32 0.0, %v376
        %378 = vmatprep.mubr.f32.mxu0 0.0
        %379 = vmatmul.mubr.f32.gmra.mxu0 %v285
        %v380 = vpop.f32.mrf.mxu0
        %v381 = vadd.f32 0.0, %v380
        %v382 = vpop.f32.mrf.mxu0
        %v383 = vadd.f32 0.0, %v382
        %384 = vmatprep.mubr.f32.mxu0 0.0
        %385 = vmatmul.mubr.f32.gmra.mxu0 %v288
        %v386 = vpop.f32.mrf.mxu0
        %v387 = vadd.f32 0.0, %v386
        %v388 = vpop.f32.mrf.mxu0
        %v389 = vadd.f32 0.0, %v388
        %390 = vmatprep.mubr.f32.mxu0 0.0
        %391 = vmatmul.mubr.f32.gmra.mxu0 %v291
        %v392 = vpop.f32.mrf.mxu0
        %v393 = vadd.f32 0.0, %v392
        %v394 = vpop.f32.mrf.mxu0
        %v395 = vadd.f32 0.0, %v394
        %396 = vmatprep.mubr.f32.mxu0 0.0
        %397 = vmatmul.mubr.f32.gmra.mxu0 %v294
        %v398 = vpop.f32.mrf.mxu0
        %v399 = vadd.f32 0.0, %v398
        %v400 = vpop.f32.mrf.mxu0
        %v401 = vadd.f32 0.0, %v400
        %402 = vmatprep.mubr.f32.mxu0 0.0
        %403 = vmatmul.mubr.f32.gmra.mxu0 %v297
        %v404 = vpop.f32.mrf.mxu0
        %v405 = vadd.f32 0.0, %v404
        %v406 = vpop.f32.mrf.mxu0
        %v407 = vadd.f32 0.0, %v406
        %408 = vmatprep.mubr.f32.mxu0 0.0
        %409 = vmatmul.mubr.f32.gmra.mxu0 %v300
        %v410 = vpop.f32.mrf.mxu0
        %v411 = vadd.f32 0.0, %v410
        %v412 = vpop.f32.mrf.mxu0
        %v413 = vadd.f32 0.0, %v412
        %414 = vdwg.mxu0
        %v415 = vmul.f32 %v369, 2.0
        %v416 = vmul.f32 %v371, 2.0
        %v417 = vmul.f32 %v375, 2.0
        %v418 = vmul.f32 %v377, 2.0
        %v419 = vmul.f32 %v381, 2.0
        %v420 = vmul.f32 %v383, 2.0
        %v421 = vmul.f32 %v387, 2.0
        %v422 = vmul.f32 %v389, 2.0
        %v423 = vmul.f32 %v393, 2.0
        %v424 = vmul.f32 %v395, 2.0
        %v425 = vmul.f32 %v399, 2.0
        %v426 = vmul.f32 %v401, 2.0
        %v427 = vmul.f32 %v405, 2.0
        %v428 = vmul.f32 %v407, 2.0
        %v429 = vmul.f32 %v411, 2.0
        %v430 = vmul.f32 %v413, 2.0
        %432 = vset.pattern.permute.xlu0 0
        %433 = vperm.xlu0 %432, %v269
        %v434 = vpop.permute.xlu0 %433
        %437 = vset.pattern.permute.xlu0 0
        %438 = vperm.xlu0 %437, %v270
        %v439 = vpop.permute.xlu0 %438
        %442 = vset.pattern.permute.xlu0 0
        %443 = vperm.xlu0 %442, %v271
        %v444 = vpop.permute.xlu0 %443
        %447 = vset.pattern.permute.xlu0 0
        %448 = vperm.xlu0 %447, %v272
        %v449 = vpop.permute.xlu0 %448
        %452 = vset.pattern.permute.xlu0 0
        %453 = vperm.xlu0 %452, %v273
        %v454 = vpop.permute.xlu0 %453
        %457 = vset.pattern.permute.xlu0 0
        %458 = vperm.xlu0 %457, %v274
        %v459 = vpop.permute.xlu0 %458
        %462 = vset.pattern.permute.xlu0 0
        %463 = vperm.xlu0 %462, %v275
        %v464 = vpop.permute.xlu0 %463
        %467 = vset.pattern.permute.xlu0 0
        %468 = vperm.xlu0 %467, %v276
        %v469 = vpop.permute.xlu0 %468
        %v471 = vsub.f32 %v415, %v434
        %v472 = vsub.f32 %v416, %v434
        %v473 = vsub.f32 %v417, %v439
        %v474 = vsub.f32 %v418, %v439
        %v475 = vsub.f32 %v419, %v444
        %v476 = vsub.f32 %v420, %v444
        %v477 = vsub.f32 %v421, %v449
        %v478 = vsub.f32 %v422, %v449
        %v479 = vsub.f32 %v423, %v454
        %v480 = vsub.f32 %v424, %v454
        %v481 = vsub.f32 %v425, %v459
        %v482 = vsub.f32 %v426, %v459
        %v483 = vsub.f32 %v427, %v464
        %v484 = vsub.f32 %v428, %v464
        %v485 = vsub.f32 %v429, %v469
        %v486 = vsub.f32 %v430, %v469
        %v487 = vlaneseq
        %v488 = vshrl.u32 %v487, 7
        %v489 = vadd.s32 %v488, 8
        %v490 = vadd.s32 %v488, 16
        %v491 = vadd.s32 %v488, 24
        %v492 = vadd.s32 %v488, 32
        %v493 = vadd.s32 %v488, 40
        %v494 = vadd.s32 %v488, 48
        %v495 = vadd.s32 %v488, 56
        %v496 = vcvt.s32.f32 %v488
        %v497 = vcvt.s32.f32 %v489
        %v498 = vcvt.s32.f32 %v490
        %v499 = vcvt.s32.f32 %v491
        %v500 = vcvt.s32.f32 %v492
        %v501 = vcvt.s32.f32 %v493
        %v502 = vcvt.s32.f32 %v494
        %v503 = vcvt.s32.f32 %v495
        %v504 = vmax.f32 %v471, %v475
        %v505 = vmax.f32 %v473, %v477
        %v506 = vmax.f32 %v504, %v479
        %v507 = vmax.f32 %v505, %v481
        %v508 = vmax.f32 %v506, %v483
        %v509 = vmax.f32 %v507, %v485
        %v510 = vmax.f32 %v508, %v509
        %v511 = vrot.slane %v510, 4
        %v512 = vmax.f32 %v510, %v511
        %v513 = vrot.slane %v512, 2
        %v514 = vmax.f32 %v512, %v513
        %v515 = vrot.slane %v514, 1
        %v516 = vmax.f32 %v514, %v515
        %v517 = vmax.f32 %v472, %v476
        %v518 = vmax.f32 %v474, %v478
        %v519 = vmax.f32 %v517, %v480
        %v520 = vmax.f32 %v518, %v482
        %v521 = vmax.f32 %v519, %v484
        %v522 = vmax.f32 %v520, %v486
        %v523 = vmax.f32 %v521, %v522
        %v524 = vrot.slane %v523, 4
        %v525 = vmax.f32 %v523, %v524
        %v526 = vrot.slane %v525, 2
        %v527 = vmax.f32 %v525, %v526
        %v528 = vrot.slane %v527, 1
        %v529 = vmax.f32 %v527, %v528
        %vm530 = vcmp.eq.f32.partialorder %v471, %v516
        %vm531 = vcmp.eq.f32.partialorder %v472, %v529
        %vm532 = vcmp.eq.f32.partialorder %v473, %v516
        %vm533 = vcmp.eq.f32.partialorder %v474, %v529
        %vm534 = vcmp.eq.f32.partialorder %v475, %v516
        %vm535 = vcmp.eq.f32.partialorder %v476, %v529
        %vm536 = vcmp.eq.f32.partialorder %v477, %v516
        %vm537 = vcmp.eq.f32.partialorder %v478, %v529
        %vm538 = vcmp.eq.f32.partialorder %v479, %v516
        %vm539 = vcmp.eq.f32.partialorder %v480, %v529
        %vm540 = vcmp.eq.f32.partialorder %v481, %v516
        %vm541 = vcmp.eq.f32.partialorder %v482, %v529
        %vm542 = vcmp.eq.f32.partialorder %v483, %v516
        %vm543 = vcmp.eq.f32.partialorder %v484, %v529
        %vm544 = vcmp.eq.f32.partialorder %v485, %v516
        %vm545 = vcmp.eq.f32.partialorder %v486, %v529
        %v546 = vsel %vm530, %v496, 64.0
        %v547 = vsel %vm531, %v496, 64.0
        %v548 = vsel %vm532, %v497, 64.0
        %v549 = vsel %vm533, %v497, 64.0
        %v550 = vsel %vm534, %v498, 64.0
        %v551 = vsel %vm535, %v498, 64.0
        %v552 = vsel %vm536, %v499, 64.0
        %v553 = vsel %vm537, %v499, 64.0
        %v554 = vsel %vm538, %v500, 64.0
        %v555 = vsel %vm539, %v500, 64.0
        %v556 = vsel %vm540, %v501, 64.0
        %v557 = vsel %vm541, %v501, 64.0
        %v558 = vsel %vm542, %v502, 64.0
        %v559 = vsel %vm543, %v502, 64.0
        %v560 = vsel %vm544, %v503, 64.0
        %v561 = vsel %vm545, %v503, 64.0
        %v562 = vmin.f32 %v546, %v550
        %v563 = vmin.f32 %v548, %v552
        %v564 = vmin.f32 %v562, %v554
        %v565 = vmin.f32 %v563, %v556
        %v566 = vmin.f32 %v564, %v558
        %v567 = vmin.f32 %v565, %v560
        %v568 = vmin.f32 %v566, %v567
        %v569 = vrot.slane %v568, 4
        %v570 = vmin.f32 %v568, %v569
        %v571 = vrot.slane %v570, 2
        %v572 = vmin.f32 %v570, %v571
        %v573 = vrot.slane %v572, 1
        %v574 = vmin.f32 %v572, %v573
        %v575 = vmin.f32 %v547, %v551
        %v576 = vmin.f32 %v549, %v553
        %v577 = vmin.f32 %v575, %v555
        %v578 = vmin.f32 %v576, %v557
        %v579 = vmin.f32 %v577, %v559
        %v580 = vmin.f32 %v578, %v561
        %v581 = vmin.f32 %v579, %v580
        %v582 = vrot.slane %v581, 4
        %v583 = vmin.f32 %v581, %v582
        %v584 = vrot.slane %v583, 2
        %v585 = vmin.f32 %v583, %v584
        %v586 = vrot.slane %v585, 1
        %v587 = vmin.f32 %v585, %v586
        %vm588 = vcmp.eq.f32.partialorder %v496, %v574
        %vm589 = vcmp.eq.f32.partialorder %v496, %v587
        %vm590 = vcmp.eq.f32.partialorder %v497, %v574
        %vm591 = vcmp.eq.f32.partialorder %v497, %v587
        %vm592 = vcmp.eq.f32.partialorder %v498, %v574
        %vm593 = vcmp.eq.f32.partialorder %v498, %v587
        %vm594 = vcmp.eq.f32.partialorder %v499, %v574
        %vm595 = vcmp.eq.f32.partialorder %v499, %v587
        %vm596 = vcmp.eq.f32.partialorder %v500, %v574
        %vm597 = vcmp.eq.f32.partialorder %v500, %v587
        %vm598 = vcmp.eq.f32.partialorder %v501, %v574
        %vm599 = vcmp.eq.f32.partialorder %v501, %v587
        %vm600 = vcmp.eq.f32.partialorder %v502, %v574
        %vm601 = vcmp.eq.f32.partialorder %v502, %v587
        %vm602 = vcmp.eq.f32.partialorder %v503, %v574
        %vm603 = vcmp.eq.f32.partialorder %v503, %v587
        %v604 = vsel %vm588, 1, 0
        %v605 = vsel %vm589, 1, 0
        %v606 = vsel %vm590, 1, 0
        %v607 = vsel %vm591, 1, 0
        %v608 = vsel %vm592, 1, 0
        %v609 = vsel %vm593, 1, 0
        %v610 = vsel %vm594, 1, 0
        %v611 = vsel %vm595, 1, 0
        %v612 = vsel %vm596, 1, 0
        %v613 = vsel %vm597, 1, 0
        %v614 = vsel %vm598, 1, 0
        %v615 = vsel %vm599, 1, 0
        %v616 = vsel %vm600, 1, 0
        %v617 = vsel %vm601, 1, 0
        %v618 = vsel %vm602, 1, 0
        %v619 = vsel %vm603, 1, 0
        %v620 = vcvt.s32.f32 %v604
        %v621 = vcvt.s32.f32 %v605
        %v622 = vcvt.s32.f32 %v606
        %v623 = vcvt.s32.f32 %v607
        %v624 = vcvt.s32.f32 %v608
        %v625 = vcvt.s32.f32 %v609
        %v626 = vcvt.s32.f32 %v610
        %v627 = vcvt.s32.f32 %v611
        %v628 = vcvt.s32.f32 %v612
        %v629 = vcvt.s32.f32 %v613
        %v630 = vcvt.s32.f32 %v614
        %v631 = vcvt.s32.f32 %v615
        %v632 = vcvt.s32.f32 %v616
        %v633 = vcvt.s32.f32 %v617
        %v634 = vcvt.s32.f32 %v618
        %v635 = vcvt.s32.f32 %v619
        %636 = vxpose.xlu0.b32.start [1/16] %v261, 128
        %637 = vxpose.xlu0.b32.cont [2/16] %v262, 128
        %638 = vxpose.xlu0.b32.cont [3/16] %v263, 128
        %639 = vxpose.xlu0.b32.cont [4/16] %v264, 128
        %640 = vxpose.xlu0.b32.cont [5/16] %v265, 128
        %641 = vxpose.xlu0.b32.cont [6/16] %v266, 128
        %642 = vxpose.xlu0.b32.cont [7/16] %v267, 128
        %643 = vxpose.xlu0.b32.cont [8/16] %v268, 128
        %644 = vxpose.xlu0.b32.cont [9/16] 0.0, 128
        %645 = vxpose.xlu0.b32.cont [10/16] 0.0, 128
        %646 = vxpose.xlu0.b32.cont [11/16] 0.0, 128
        %647 = vxpose.xlu0.b32.cont [12/16] 0.0, 128
        %648 = vxpose.xlu0.b32.cont [13/16] 0.0, 128
        %649 = vxpose.xlu0.b32.cont [14/16] 0.0, 128
        %650 = vxpose.xlu0.b32.cont [15/16] 0.0, 128
        %651 = vxpose.xlu0.b32.end [16/16] 0.0, 128
        %v652 = vpop.trf.xlu0
        %v653 = vpop.trf.xlu0
        %v654 = vpop.trf.xlu0
        %v655 = vpop.trf.xlu0
        %v656 = vpop.trf.xlu0
        %v657 = vpop.trf.xlu0
        %v658 = vpop.trf.xlu0
        %v659 = vpop.trf.xlu0
        %v660 = vpop.trf.xlu0
        %v661 = vpop.trf.xlu0
        %v662 = vpop.trf.xlu0
        %v663 = vpop.trf.xlu0
        %v664 = vpop.trf.xlu0
        %v665 = vpop.trf.xlu0
        %v666 = vpop.trf.xlu0
        %v667 = vpop.trf.xlu0
        %vm668 = vcmask 523264
        %v670 = vsel %vm668, %v652, 0
        %v673 = vsel %vm668, %v653, 0
        %v676 = vsel %vm668, %v654, 0
        %v679 = vsel %vm668, %v655, 0
        %681 = vmatprep.subr.mxu0 0.0
        %682 = vmatpush1.msra.mxu0 0.0
        %683 = vmatprep.subr.mxu0 0.0
        %684 = vmatpush1.msra.mxu0 0.0
        %685 = vmatprep.subr.mxu0 0.0
        %686 = vmatpush1.msra.mxu0 0.0
        %687 = vmatprep.subr.mxu0 0.0
        %688 = vmatpush1.msra.mxu0 0.0
        %689 = vmatprep.subr.mxu0 0.0
        %690 = vmatpush1.msra.mxu0 0.0
        %691 = vmatprep.subr.mxu0 0.0
        %692 = vmatpush1.msra.mxu0 0.0
        %693 = vmatprep.subr.mxu0 0.0
        %694 = vmatpush1.msra.mxu0 0.0
        %695 = vmatprep.subr.mxu0 0.0
        %696 = vmatpush1.msra.mxu0 0.0
        %697 = vmatprep.subr.mxu0 %v635
        %698 = vmatpush1.msra.mxu0 %v634
        %699 = vmatprep.subr.mxu0 %v633
        %700 = vmatpush1.msra.mxu0 %v632
        %701 = vmatprep.subr.mxu0 %v631
        %702 = vmatpush1.msra.mxu0 %v630
        %703 = vmatprep.subr.mxu0 %v629
        %704 = vmatpush1.msra.mxu0 %v628
        %705 = vmatprep.subr.mxu0 %v627
        %706 = vmatpush1.msra.mxu0 %v626
        %707 = vmatprep.subr.mxu0 %v625
        %708 = vmatpush1.msra.mxu0 %v624
        %709 = vmatprep.subr.mxu0 %v623
        %710 = vmatpush1.msra.mxu0 %v622
        %711 = vmatprep.subr.mxu0 %v621
        %712 = vmatpush1.msra.mxu0 %v620
        %713 = vmatprep.subr.mxu0 0.0
        %714 = vmatpush2.msra.mxu0 0.0
        %715 = vmatprep.subr.mxu0 0.0
        %716 = vmatpush2.msra.mxu0 0.0
        %717 = vmatprep.subr.mxu0 0.0
        %718 = vmatpush2.msra.mxu0 0.0
        %719 = vmatprep.subr.mxu0 0.0
        %720 = vmatpush2.msra.mxu0 0.0
        %721 = vmatprep.subr.mxu0 0.0
        %722 = vmatpush2.msra.mxu0 0.0
        %723 = vmatprep.subr.mxu0 0.0
        %724 = vmatpush2.msra.mxu0 0.0
        %725 = vmatprep.subr.mxu0 0.0
        %726 = vmatpush2.msra.mxu0 0.0
        %727 = vmatprep.subr.mxu0 0.0
        %728 = vmatpush2.msra.mxu0 0.0
        %729 = vmatprep.subr.mxu0 0.0
        %730 = vmatpush2.msra.mxu0 0.0
        %731 = vmatprep.subr.mxu0 0.0
        %732 = vmatpush2.msra.mxu0 0.0
        %733 = vmatprep.subr.mxu0 0.0
        %734 = vmatpush2.msra.mxu0 0.0
        %735 = vmatprep.subr.mxu0 0.0
        %736 = vmatpush2.msra.mxu0 0.0
        %737 = vmatprep.subr.mxu0 0.0
        %738 = vmatpush2.msra.mxu0 0.0
        %739 = vmatprep.subr.mxu0 0.0
        %740 = vmatpush2.msra.mxu0 0.0
        %741 = vmatprep.subr.mxu0 0.0
        %742 = vmatpush2.msra.mxu0 0.0
        %743 = vmatprep.subr.mxu0 0.0
        %744 = vmatpush2.msra.mxu0 0.0
        %745 = vmatprep.mubr.f32.mxu0 0.0
        %746 = vmatmul.mubr.f32.gmra.mxu0 %v670
        %v747 = vpop.f32.mrf.mxu0
        %v748 = vadd.f32 0.0, %v747
        %v749 = vpop.f32.mrf.mxu0
        %v750 = vadd.f32 0.0, %v749
        %751 = vmatprep.mubr.f32.mxu0 0.0
        %752 = vmatmul.mubr.f32.gmra.mxu0 %v673
        %v753 = vpop.f32.mrf.mxu0
        %v754 = vadd.f32 0.0, %v753
        %v755 = vpop.f32.mrf.mxu0
        %v756 = vadd.f32 0.0, %v755
        %757 = vmatprep.mubr.f32.mxu0 0.0
        %758 = vmatmul.mubr.f32.gmra.mxu0 %v676
        %v759 = vpop.f32.mrf.mxu0
        %v760 = vadd.f32 0.0, %v759
        %v761 = vpop.f32.mrf.mxu0
        %v762 = vadd.f32 0.0, %v761
        %763 = vmatprep.mubr.f32.mxu0 0.0
        %764 = vmatmul.mubr.f32.gmra.mxu0 %v679
        %v765 = vpop.f32.mrf.mxu0
        %v766 = vadd.f32 0.0, %v765
        %v767 = vpop.f32.mrf.mxu0
        %v768 = vadd.f32 0.0, %v767
        %769 = vdwg.mxu0
        %v770 = vcvt.f32.s32.to.zero.pseudo %v574
        %v771 = vcvt.f32.s32.to.zero.pseudo %v587
        %s772 = smul.u32 %s23, 64
        %v773 = vstv %s772
        %v774 = vadd.s32 %v770, %v773
        %v775 = vadd.s32 %v771, %v773
        %p776 = scmp.eq.s32.totalorder %s23, 0
        // Predicated region
        $region33: #{tpu_custom_call.1} parent=31 // pred_check
          %p777 = pneg %p776
        $region34: #{tpu_custom_call.1} parent=31 // pred_check_branch
          %779 = sbr.rel (%p777) target = $region36
        $region35: #{tpu_custom_call.1} parent=31 // pred_region
          %v782 = vcombine.low %v516, %v529
          %v784 = vunpack.c.l.s4 1966171168
          %v785 = vunpack.c.0.s8 %v784
          %v786 = vlaneseq
          %v787 = vshrl.u32 %v786, 7
          %v788 = vsub.s32 %v785, %v787
          %v789 = vrot.slane %v782, %v788
          %v791 = vunpack.c.l.s4 1966171168
          %v792 = vunpack.c.0.s8 %v791
          %v793 = vlaneseq
          %v794 = vshrl.u32 %v793, 7
          %v795 = vsub.s32 %v792, %v794
          %v796 = vrot.slane %v789, %v795
          %v798 = vlaneseq
          %vm799 = vcmp.ge.s32.totalorder %v798, 0
          %vm800 = vcmp.lt.s32.totalorder %v798, 256
          %vm801 = vmand %vm799, %vm800
          %802 = vst.msk [vmem:[#allocation2] sm:$0x3] %vm801, %v796
          %v803 = vcombine.low %v774, %v775
          %v805 = vunpack.c.l.s4 1966171168
          %v806 = vunpack.c.0.s8 %v805
          %v807 = vlaneseq
          %v808 = vshrl.u32 %v807, 7
          %v809 = vsub.s32 %v806, %v808
          %v810 = vrot.slane %v803, %v809
          %v812 = vunpack.c.l.s4 1966171168
          %v813 = vunpack.c.0.s8 %v812
          %v814 = vlaneseq
          %v815 = vshrl.u32 %v814, 7
          %v816 = vsub.s32 %v813, %v815
          %v817 = vrot.slane %v810, %v816
          %818 = vst.msk [vmem:[#allocation5] sm:$0x3] %vm801, %v817
          %819 = vst [vmem:[#allocation3] sm:$0xff] %v748
          %820 = vst [vmem:[#allocation3 + $0x8] sm:$0xff] %v750
          %821 = vst [vmem:[#allocation3 + $0x10] sm:$0xff] %v754
          %822 = vst [vmem:[#allocation3 + $0x18] sm:$0xff] %v756
          %823 = vst [vmem:[#allocation3 + $0x20] sm:$0xff] %v760
          %824 = vst [vmem:[#allocation3 + $0x28] sm:$0xff] %v762
          %825 = vst [vmem:[#allocation3 + $0x30] sm:$0xff] %v766
          %826 = vst [vmem:[#allocation3 + $0x38] sm:$0xff] %v768
        $region36: #{tpu_custom_call.1} parent=31 // pred_fallthru
          _
        %p827 = scmp.gt.s32.totalorder %s23, 0
        // Predicated region
        $region37: #{tpu_custom_call.1} parent=31 // pred_check
          %p828 = pneg %p827
        $region38: #{tpu_custom_call.1} parent=31 // pred_check_branch
          %830 = sbr.rel (%p828) target = $region40
        $region39: #{tpu_custom_call.1} parent=31 // pred_region
          %v831 = vld [vmem:[#allocation2] sm:$0x3]
          %v833 = vlaneseq
          %v834 = vshrl.u32 %v833, 7
          %v835 = vsub.s32 0, %v834
          %v836 = vrot.slane %v831, %v835
          %v837 = vlaneseq
          %v838 = vshrl.u32 %v837, 7
          %v839 = vsub.s32 1, %v838
          %v840 = vrot.slane %v831, %v839
          %vm843 = vcmp.gt.f32.partialorder %v516, %v836
          %vm844 = vcmp.gt.f32.partialorder %v529, %v840
          %v845 = vsel %vm843, %v516, %v836
          %v846 = vsel %vm844, %v529, %v840
          %v849 = vcombine.low %v845, %v846
          %v851 = vunpack.c.l.s4 1966171168
          %v852 = vunpack.c.0.s8 %v851
          %v853 = vlaneseq
          %v854 = vshrl.u32 %v853, 7
          %v855 = vsub.s32 %v852, %v854
          %v856 = vrot.slane %v849, %v855
          %v858 = vunpack.c.l.s4 1966171168
          %v859 = vunpack.c.0.s8 %v858
          %v860 = vlaneseq
          %v861 = vshrl.u32 %v860, 7
          %v862 = vsub.s32 %v859, %v861
          %v863 = vrot.slane %v856, %v862
          %v865 = vlaneseq
          %vm866 = vcmp.ge.s32.totalorder %v865, 0
          %vm867 = vcmp.lt.s32.totalorder %v865, 256
          %vm868 = vmand %vm866, %vm867
          %869 = vst.msk [vmem:[#allocation2] sm:$0x3] %vm868, %v863
          %v870 = vld [vmem:[#allocation5] sm:$0x3]
          %v871 = vlaneseq
          %v872 = vshrl.u32 %v871, 7
          %v873 = vsub.s32 0, %v872
          %v874 = vrot.slane %v870, %v873
          %v875 = vlaneseq
          %v876 = vshrl.u32 %v875, 7
          %v877 = vsub.s32 1, %v876
          %v878 = vrot.slane %v870, %v877
          %v879 = vsel %vm843, %v774, %v874
          %v880 = vsel %vm844, %v775, %v878
          %v881 = vcombine.low %v879, %v880
          %v883 = vunpack.c.l.s4 1966171168
          %v884 = vunpack.c.0.s8 %v883
          %v885 = vlaneseq
          %v886 = vshrl.u32 %v885, 7
          %v887 = vsub.s32 %v884, %v886
          %v888 = vrot.slane %v881, %v887
          %v890 = vunpack.c.l.s4 1966171168
          %v891 = vunpack.c.0.s8 %v890
          %v892 = vlaneseq
          %v893 = vshrl.u32 %v892, 7
          %v894 = vsub.s32 %v891, %v893
          %v895 = vrot.slane %v888, %v894
          %896 = vst.msk [vmem:[#allocation5] sm:$0x3] %vm868, %v895
          %v897 = vld [vmem:[#allocation3] sm:$0xff]
          %v898 = vld [vmem:[#allocation3 + $0x8] sm:$0xff]
          %v899 = vld [vmem:[#allocation3 + $0x10] sm:$0xff]
          %v900 = vld [vmem:[#allocation3 + $0x18] sm:$0xff]
          %v901 = vld [vmem:[#allocation3 + $0x20] sm:$0xff]
          %v902 = vld [vmem:[#allocation3 + $0x28] sm:$0xff]
          %v903 = vld [vmem:[#allocation3 + $0x30] sm:$0xff]
          %v904 = vld [vmem:[#allocation3 + $0x38] sm:$0xff]
          %v905 = vsel %vm843, 1, 0
          %v906 = vsel %vm844, 1, 0
          %v907 = vlaneseq
          %v908 = vshrl.u32 %v907, 7
          %v909 = vsub.s32 0, %v908
          %v910 = vrot.slane %v905, %v909
          %v911 = vlaneseq
          %v912 = vshrl.u32 %v911, 7
          %v913 = vsub.s32 0, %v912
          %v914 = vrot.slane %v906, %v913
          %vm915 = vcmp.eq.s32.totalorder %v910, 1
          %vm916 = vcmp.eq.s32.totalorder %v914, 1
          %v917 = vsel %vm915, %v748, %v897
          %v918 = vsel %vm916, %v750, %v898
          %v919 = vsel %vm915, %v754, %v899
          %v920 = vsel %vm916, %v756, %v900
          %v921 = vsel %vm915, %v760, %v901
          %v922 = vsel %vm916, %v762, %v902
          %v923 = vsel %vm915, %v766, %v903
          %v924 = vsel %vm916, %v768, %v904
          %925 = vst [vmem:[#allocation3] sm:$0xff] %v917
          %926 = vst [vmem:[#allocation3 + $0x8] sm:$0xff] %v918
          %927 = vst [vmem:[#allocation3 + $0x10] sm:$0xff] %v919
          %928 = vst [vmem:[#allocation3 + $0x18] sm:$0xff] %v920
          %929 = vst [vmem:[#allocation3 + $0x20] sm:$0xff] %v921
          %930 = vst [vmem:[#allocation3 + $0x28] sm:$0xff] %v922
          %931 = vst [vmem:[#allocation3 + $0x30] sm:$0xff] %v923
          %932 = vst [vmem:[#allocation3 + $0x38] sm:$0xff] %v924
        $region40: #{tpu_custom_call.1} parent=31 // pred_fallthru
          _
        // Predicated region
        $region41: #{tpu_custom_call.1} parent=31 // pred_check
          %p933 = pneg %p126
        $region42: #{tpu_custom_call.1} parent=31 // pred_check_branch
          %935 = sbr.rel (%p933) target = $region44
        $region43: #{tpu_custom_call.1} parent=31 // pred_region
          %s936 = smul.u32 2, %s22
          %s938 = ssub.s32 1024, 1024
          %939 = vsyncadd [#allocation4], %s938
          %s940 = smul.addr %s936, 128
          %s941 = scalar_lea.hbm %s3, %s940
          %s942 = sshll.u32 [#allocation3], 4
          %s943 = int_to_ptr.vmem [resolvable:$true] %s942
          %948 = dma.vmem_to_hbm [thread:$0]  %s943, 1024, %s941, [#allocation4], 256, 256, 16
        $region44: #{tpu_custom_call.1} parent=31 // pred_fallthru
          _
        // Predicated region
        $region45: #{tpu_custom_call.1} parent=31 // pred_check
          %p949 = pneg %p152
        $region46: #{tpu_custom_call.1} parent=31 // pred_check_branch
          %951 = sbr.rel (%p949) target = $region48
        $region47: #{tpu_custom_call.1} parent=31 // pred_region
          %s952 = smul.u32 2, %s22
          %s954 = ssub.s32 32, 32
          %955 = vsyncadd [#allocation6], %s954
          %s956 = smul.addr %s952, 16
          %s957 = scalar_lea.hbm %s4, %s956
          %s959 = sshll.u32 [#allocation5], 4
          %s960 = int_to_ptr.vmem [resolvable:$true] %s959
          %962 = dma.vmem_to_hbm [thread:$0]  %s960, 32, %s957, [#allocation6]
        $region48: #{tpu_custom_call.1} parent=31 // pred_fallthru
          _
        // Predicated region
        $region49: #{tpu_custom_call.1} parent=31 // pred_check
          %p963 = pneg %p126
        $region50: #{tpu_custom_call.1} parent=31 // pred_check_branch
          %965 = sbr.rel (%p963) target = $region52
        $region51: #{tpu_custom_call.1} parent=31 // pred_region
          %966 = dma.done [#allocation4], 1024
        $region52: #{tpu_custom_call.1} parent=31 // pred_fallthru
          _
        // Predicated region
        $region53: #{tpu_custom_call.1} parent=31 // pred_check
          %p967 = pneg %p152
        $region54: #{tpu_custom_call.1} parent=31 // pred_check_branch
          %969 = sbr.rel (%p967) target = $region56
        $region55: #{tpu_custom_call.1} parent=31 // pred_region
          %970 = dma.done [#allocation6], 32
        $region56: #{tpu_custom_call.1} parent=31 // pred_fallthru
          _
      $region32: #{tpu_custom_call.1} parent=5 // pred_fallthru
        _
      %p971 = scmp.le.s32.totalorder 2, %s13
      // Predicated region
      $region57: #{tpu_custom_call.1} parent=5 // pred_check
        %p972 = pneg %p971
      $region58: #{tpu_custom_call.1} parent=5 // pred_check_branch
        %974 = sbr.rel (%p972) target = $region60
      $region59: #{tpu_custom_call.1} parent=5 // pred_region
        %s975 = ssub.s32 %s13, 2
      $region60: #{tpu_custom_call.1} parent=5 // pred_fallthru
        _
    $region6: #{tpu_custom_call.1} parent=1 // loop_footer
      %s17 = sadd.s32 1, %s13
    $region7: #{tpu_custom_call.1} parent=1 // loop_footer_branch
      %12 = sbr.rel target = $region3
    $region8: #{tpu_custom_call.1} parent=1 // loop_exit
      _
    %976 = vsyncpa [#allocation4], 1
    %s977 = scalar_lea.sflag [#allocation4], 1
    %978 = vsyncpa %s977, 1
    %979 = vsyncpa [#allocation6], 1

</llo_original>
